<compile_context>
chip_gen: v6e
topology: v6e:2x2x1
jax: 0.10.0
libtpu: 0.0.40
codegen_flags: <defaults>
</compile_context>

<pallas_src>
import jax
import jax.numpy as jnp
from jax.experimental import pallas as pl
from jax.experimental.pallas import tpu as pltpu


def _round_up(a, b):
    return ((a + b - 1) // b) * b


def _swiglu_kernel(xT_ref, w1_ref, b1_ref, w2_ref, b2_ref, wp_ref, bp_ref, oT_ref):
    """One token tile in transposed layout.

    xT_ref : (D, TILE_M)  input tile, tokens on the lane axis
    w1_ref : (H, D)       ln_1.weight  (PyTorch (out, in) layout)
    b1_ref : (H, 1)       ln_1.bias
    w2_ref : (H, D)       ln_2.weight
    b2_ref : (H, 1)       ln_2.bias
    wp_ref : (D, H)       c_proj.weight
    bp_ref : (D, 1)       c_proj.bias
    oT_ref : (D, TILE_M)  output tile (lane-dense)
    """
    xT = xT_ref[...]                                                     # (D, TM)
    h1 = jnp.dot(w1_ref[...], xT, preferred_element_type=jnp.float32) + b1_ref[...]
    h2 = jnp.dot(w2_ref[...], xT, preferred_element_type=jnp.float32) + b2_ref[...]
    # SiLU gate in f32: sigmoid runs on the EUP, multiplies on the VPU, both
    # co-issue with the MXU work (also correct on v5e which lacks bf16 VPU/EUP).
    h = h1 * (h2 * jax.nn.sigmoid(h2))                                   # (H, TM)
    yT = jnp.dot(wp_ref[...], h, preferred_element_type=jnp.float32) + bp_ref[...]
    oT_ref[...] = yT.astype(oT_ref.dtype)


def expert_moe_swiglu(x, w1, b1, w2, b2, wp, bp, *, max_tile_m=512):
    """y = c_proj(ln_1(x) * silu(ln_2(x))).

    x  : (B, T, D)
    w1 : (H, D), b1 : (H,)   -- ln_1   (PyTorch nn.Linear (out, in) layout)
    w2 : (H, D), b2 : (H,)   -- ln_2
    wp : (D, H), bp : (D,)   -- c_proj
    """
    B, T, D = x.shape
    H = w1.shape[0]
    M = B * T

    # Tokens-on-lanes layout; reshape/transpose happens in XLA outside the kernel.
    xT = x.reshape(M, D).T                                               # (D, M)

    tile_m = min(max_tile_m, _round_up(M, 128))
    m_pad = _round_up(M, tile_m)
    if m_pad != M:
        xT = jnp.pad(xT, ((0, 0), (0, m_pad - M)))
    grid = (m_pad // tile_m,)

    b1c = b1.reshape(H, 1)
    b2c = b2.reshape(H, 1)
    bpc = bp.reshape(D, 1)

    # Weights/biases: same block at every grid step -> stays VMEM-resident.
    resident = lambda shape: pl.BlockSpec(shape, lambda i: (0, 0))

    flops = 2 * m_pad * (3 * D * H) + 4 * m_pad * H
    bytes_accessed = 4 * (2 * m_pad * D + 3 * D * H + 2 * H + D)
    cost = pl.CostEstimate(
        flops=flops, transcendentals=m_pad * H, bytes_accessed=bytes_accessed
    )

    outT = pl.pallas_call(
        _swiglu_kernel,
        out_shape=jax.ShapeDtypeStruct((D, m_pad), x.dtype),
        grid_spec=pltpu.PrefetchScalarGridSpec(
            num_scalar_prefetch=0,
            grid=grid,
            in_specs=[
                pl.BlockSpec((D, tile_m), lambda i: (0, i)),   # x^T tile (streamed)
                resident((H, D)),                              # w1
                resident((H, 1)),                              # b1
                resident((H, D)),                              # w2
                resident((H, 1)),                              # b2
                resident((D, H)),                              # wp
                resident((D, 1)),                              # bp
            ],
            out_specs=pl.BlockSpec((D, tile_m), lambda i: (0, i)),
        ),
        compiler_params=pltpu.CompilerParams(
            # v7x: shard token tiles across the 2 TensorCores; no-op on v5e/v6e.
            dimension_semantics=("parallel",),
        ),
        cost_estimate=cost,
    )(xT, w1, b1c, w2, b2c, wp, bpc)

    return outT[:, :M].T.reshape(B, T, D)


if __name__ == "__main__":
    # Config matches GPTConfig: n_embd=8 -> hidden_dim=32.  Small test shapes.
    n_embd = 8
    hidden = 4 * n_embd
    batch, seq = 2, 8

    key = jax.random.PRNGKey(0)
    kx, k1, kb1, k2, kb2, kp, kbp = jax.random.split(key, 7)

    x = jax.random.normal(kx, (batch, seq, n_embd), dtype=jnp.float32)

    # PyTorch nn.Linear parameter layout: weight (out_features, in_features).
    w1 = jax.random.normal(k1, (hidden, n_embd), dtype=jnp.float32) * 0.1
    b1 = jax.random.normal(kb1, (hidden,), dtype=jnp.float32) * 0.1
    w2 = jax.random.normal(k2, (hidden, n_embd), dtype=jnp.float32) * 0.1
    b2 = jax.random.normal(kb2, (hidden,), dtype=jnp.float32) * 0.1
    wp = jax.random.normal(kp, (n_embd, hidden), dtype=jnp.float32) * 0.1
    bp = jax.random.normal(kbp, (n_embd,), dtype=jnp.float32) * 0.1

    y = expert_moe_swiglu(x, w1, b1, w2, b2, wp, bp)
    y = jax.block_until_ready(y)

    # Pure-JAX reference of the same forward pass (ln_* are Linear layers).
    h1 = x @ w1.T + b1
    h2 = x @ w2.T + b2
    ref = (h1 * (h2 * jax.nn.sigmoid(h2))) @ wp.T + bp

    assert y.shape == (batch, seq, n_embd)
    assert jnp.allclose(y, ref, atol=1e-5, rtol=1e-5), "mismatch vs reference"

    print("KERNEL_OK")
</pallas_src>

<mosaic_0001>
module attributes {stable_mosaic.version = 11 : i64} {
  func.func @_swiglu_kernel(%arg0: i32, %arg1: memref<8x128xf32, #tpu.memory_space<vmem>>, %arg2: memref<32x8xf32, #tpu.memory_space<vmem>>, %arg3: memref<32x1xf32, #tpu.memory_space<vmem>>, %arg4: memref<32x8xf32, #tpu.memory_space<vmem>>, %arg5: memref<32x1xf32, #tpu.memory_space<vmem>>, %arg6: memref<8x32xf32, #tpu.memory_space<vmem>>, %arg7: memref<8x1xf32, #tpu.memory_space<vmem>>, %arg8: memref<8x128xf32, #tpu.memory_space<vmem>>) attributes {dimension_semantics = [#tpu.dimension_semantics<parallel>], iteration_bounds = array<i64: 1>, scalar_prefetch = 0 : i64, scratch_operands = 0 : i64, tpu.core_type = #tpu.core_type<tc>, window_params = [{transform_indices = @transform_0, window_bounds = array<i64: 8, 128>}, {pipeline_mode = #tpu.pipeline_mode<synchronous>, transform_indices = @transform_1, window_bounds = array<i64: 32, 8>}, {pipeline_mode = #tpu.pipeline_mode<synchronous>, transform_indices = @transform_2, window_bounds = array<i64: 32, 1>}, {pipeline_mode = #tpu.pipeline_mode<synchronous>, transform_indices = @transform_3, window_bounds = array<i64: 32, 8>}, {pipeline_mode = #tpu.pipeline_mode<synchronous>, transform_indices = @transform_4, window_bounds = array<i64: 32, 1>}, {pipeline_mode = #tpu.pipeline_mode<synchronous>, transform_indices = @transform_5, window_bounds = array<i64: 8, 32>}, {pipeline_mode = #tpu.pipeline_mode<synchronous>, transform_indices = @transform_6, window_bounds = array<i64: 8, 1>}, {transform_indices = @transform_7, window_bounds = array<i64: 8, 128>}]} {
    %c0 = arith.constant 0 : index
    %c0_0 = arith.constant 0 : index
    %0 = vector.load %arg1[%c0, %c0_0] : memref<8x128xf32, #tpu.memory_space<vmem>>, vector<8x128xf32>
    %c0_1 = arith.constant 0 : index
    %c0_2 = arith.constant 0 : index
    %1 = vector.load %arg2[%c0_1, %c0_2] : memref<32x8xf32, #tpu.memory_space<vmem>>, vector<32x8xf32>
    %cst = arith.constant dense<0.000000e+00> : vector<32x128xf32>
    %2 = tpu.matmul %1, %0, %cst {dimension_numbers = #tpu.dot_dimension_numbers<[1], [0], [0], [1], [0, 0, 1, 1], [], []>} : vector<32x8xf32>, vector<8x128xf32>, vector<32x128xf32> -> vector<32x128xf32>
    %c0_3 = arith.constant 0 : index
    %c0_4 = arith.constant 0 : index
    %3 = vector.load %arg3[%c0_3, %c0_4] : memref<32x1xf32, #tpu.memory_space<vmem>>, vector<32x1xf32>
    %4 = vector.broadcast %3 : vector<32x1xf32> to vector<32x128xf32>
    %5 = arith.addf %2, %4 : vector<32x128xf32>
    %c0_5 = arith.constant 0 : index
    %c0_6 = arith.constant 0 : index
    %6 = vector.load %arg4[%c0_5, %c0_6] : memref<32x8xf32, #tpu.memory_space<vmem>>, vector<32x8xf32>
    %cst_7 = arith.constant dense<0.000000e+00> : vector<32x128xf32>
    %7 = tpu.matmul %6, %0, %cst_7 {dimension_numbers = #tpu.dot_dimension_numbers<[1], [0], [0], [1], [0, 0, 1, 1], [], []>} : vector<32x8xf32>, vector<8x128xf32>, vector<32x128xf32> -> vector<32x128xf32>
    %c0_8 = arith.constant 0 : index
    %c0_9 = arith.constant 0 : index
    %8 = vector.load %arg5[%c0_8, %c0_9] : memref<32x1xf32, #tpu.memory_space<vmem>>, vector<32x1xf32>
    %9 = vector.broadcast %8 : vector<32x1xf32> to vector<32x128xf32>
    %10 = arith.addf %7, %9 : vector<32x128xf32>
    %11 = arith.negf %10 : vector<32x128xf32>
    %12 = math.exp %11 : vector<32x128xf32>
    %cst_10 = arith.constant 1.000000e+00 : f32
    %13 = vector.broadcast %cst_10 : f32 to vector<32x128xf32>
    %14 = arith.addf %13, %12 : vector<32x128xf32>
    %15 = arith.divf %13, %14 : vector<32x128xf32>
    %16 = arith.mulf %10, %15 : vector<32x128xf32>
    %17 = arith.mulf %5, %16 : vector<32x128xf32>
    %c0_11 = arith.constant 0 : index
    %c0_12 = arith.constant 0 : index
    %18 = vector.load %arg6[%c0_11, %c0_12] : memref<8x32xf32, #tpu.memory_space<vmem>>, vector<8x32xf32>
    %cst_13 = arith.constant dense<0.000000e+00> : vector<8x128xf32>
    %19 = tpu.matmul %18, %17, %cst_13 {dimension_numbers = #tpu.dot_dimension_numbers<[1], [0], [0], [1], [0, 0, 1, 1], [], []>} : vector<8x32xf32>, vector<32x128xf32>, vector<8x128xf32> -> vector<8x128xf32>
    %c0_14 = arith.constant 0 : index
    %c0_15 = arith.constant 0 : index
    %20 = vector.load %arg7[%c0_14, %c0_15] : memref<8x1xf32, #tpu.memory_space<vmem>>, vector<8x1xf32>
    %21 = vector.broadcast %20 : vector<8x1xf32> to vector<8x128xf32>
    %22 = arith.addf %19, %21 : vector<8x128xf32>
    %c0_16 = arith.constant 0 : index
    %c0_17 = arith.constant 0 : index
    %23 = vector.load %arg8[%c0_16, %c0_17] : memref<8x128xf32, #tpu.memory_space<vmem>>, vector<8x128xf32>
    tpu.vector_store %arg8[%c0_16, %c0_17], %22 {strides = array<i32>} : memref<8x128xf32, #tpu.memory_space<vmem>>, vector<8x128xf32>,
    return
  }
  func.func @transform_0(%arg0: i32) -> (i32, i32) {
    %c0_i32 = arith.constant 0 : i32
    %c0_i32_0 = arith.constant 0 : i32
    return %c0_i32, %arg0 : i32, i32
  }
  func.func @transform_1(%arg0: i32) -> (i32, i32) {
    %c0_i32 = arith.constant 0 : i32
    %c0_i32_0 = arith.constant 0 : i32
    %c0_i32_1 = arith.constant 0 : i32
    return %c0_i32, %c0_i32_0 : i32, i32
  }
  func.func @transform_2(%arg0: i32) -> (i32, i32) {
    %c0_i32 = arith.constant 0 : i32
    %c0_i32_0 = arith.constant 0 : i32
    %c0_i32_1 = arith.constant 0 : i32
    return %c0_i32, %c0_i32_0 : i32, i32
  }
  func.func @transform_3(%arg0: i32) -> (i32, i32) {
    %c0_i32 = arith.constant 0 : i32
    %c0_i32_0 = arith.constant 0 : i32
    %c0_i32_1 = arith.constant 0 : i32
    return %c0_i32, %c0_i32_0 : i32, i32
  }
  func.func @transform_4(%arg0: i32) -> (i32, i32) {
    %c0_i32 = arith.constant 0 : i32
    %c0_i32_0 = arith.constant 0 : i32
    %c0_i32_1 = arith.constant 0 : i32
    return %c0_i32, %c0_i32_0 : i32, i32
  }
  func.func @transform_5(%arg0: i32) -> (i32, i32) {
    %c0_i32 = arith.constant 0 : i32
    %c0_i32_0 = arith.constant 0 : i32
    %c0_i32_1 = arith.constant 0 : i32
    return %c0_i32, %c0_i32_0 : i32, i32
  }
  func.func @transform_6(%arg0: i32) -> (i32, i32) {
    %c0_i32 = arith.constant 0 : i32
    %c0_i32_0 = arith.constant 0 : i32
    %c0_i32_1 = arith.constant 0 : i32
    return %c0_i32, %c0_i32_0 : i32, i32
  }
  func.func @transform_7(%arg0: i32) -> (i32, i32) {
    %c0_i32 = arith.constant 0 : i32
    %c0_i32_0 = arith.constant 0 : i32
    return %c0_i32, %arg0 : i32, i32
  }
}

</mosaic_0001>

<llo_original>
// kernel: tpu_custom_call.1
$region0: #{tpu_custom_call.1}
  #allocation0 [shape = 'u32[]', space=smem, size = 0x4, offset = 0x4, fixed_abs, tag = 'smem constant byte address 0x4 - core index']
  #allocation1 [shape = 'u32[144,128]{1,0:T(1,128)}', space=vmem, size = 0x12000, scoped, tag = 'internal scratch']
  %s0 = inlined_call_operand.vmem [shape: f32[8,128], index: 0, kind: input, shape index: {}]
  %s1 = inlined_call_operand.vmem [shape: f32[32,8], index: 1, kind: input, shape index: {}]
  %s2 = inlined_call_operand.vmem [shape: f32[32,1], index: 2, kind: input, shape index: {}]
  %s3 = inlined_call_operand.vmem [shape: f32[32,8], index: 3, kind: input, shape index: {}]
  %s4 = inlined_call_operand.vmem [shape: f32[32,1], index: 4, kind: input, shape index: {}]
  %s5 = inlined_call_operand.vmem [shape: f32[8,32], index: 5, kind: input, shape index: {}]
  %s6 = inlined_call_operand.vmem [shape: f32[8,1], index: 6, kind: input, shape index: {}]
  %s7 = inlined_call_operand.hbm [shape: f32[8,128], index: 7, kind: output, shape index: {}]
  %s8 = sld [smem:[#allocation0]]
  $region38: #{tpu_custom_call.1} parent=0
    _
  %s10 = ssub.s32 1, %s8
  %s11 = scalar_select 0, %s10, %s8
  $region1: #{tpu_custom_call.1} parent=0
    #allocation2 [shape = 'u8[4096]{0}', space=vmem, size = 0x1000, scoped, tag = 'output window, operand 0, single buffered']
    #allocation3 [shape = 's32[1]{0}', space=sflag, size = 0x4, scoped, tag = 'scoped memory for tpu_custom_call.1']
    %12 = vsyncpa [#allocation3], 0
    // Predicated region
    $region2: #{tpu_custom_call.1} parent=1 // pred_check
      _
    $region3: #{tpu_custom_call.1} parent=1 // pred_check_branch
      %14 = sbr.rel (0) target = $region5
    $region4: #{tpu_custom_call.1} parent=1 // pred_region
      _
    $region5: #{tpu_custom_call.1} parent=1 // pred_fallthru
      _
    // Predicated region
    $region6: #{tpu_custom_call.1} parent=1 // pred_check
      _
    $region7: #{tpu_custom_call.1} parent=1 // pred_check_branch
      %16 = sbr.rel (0) target = $region9
    $region8: #{tpu_custom_call.1} parent=1 // pred_region
      _
    $region9: #{tpu_custom_call.1} parent=1 // pred_fallthru
      _
    // Predicated region
    $region10: #{tpu_custom_call.1} parent=1 // pred_check
      _
    $region11: #{tpu_custom_call.1} parent=1 // pred_check_branch
      %18 = sbr.rel (0) target = $region13
    $region12: #{tpu_custom_call.1} parent=1 // pred_region
      _
    $region13: #{tpu_custom_call.1} parent=1 // pred_fallthru
      _
    // Predicated region
    $region14: #{tpu_custom_call.1} parent=1 // pred_check
      _
    $region15: #{tpu_custom_call.1} parent=1 // pred_check_branch
      %20 = sbr.rel (0) target = $region17
    $region16: #{tpu_custom_call.1} parent=1 // pred_region
      _
    $region17: #{tpu_custom_call.1} parent=1 // pred_fallthru
      _
    // Predicated region
    $region18: #{tpu_custom_call.1} parent=1 // pred_check
      _
    $region19: #{tpu_custom_call.1} parent=1 // pred_check_branch
      %22 = sbr.rel (0) target = $region21
    $region20: #{tpu_custom_call.1} parent=1 // pred_region
      _
    $region21: #{tpu_custom_call.1} parent=1 // pred_fallthru
      _
    // Predicated region
    $region22: #{tpu_custom_call.1} parent=1 // pred_check
      _
    $region23: #{tpu_custom_call.1} parent=1 // pred_check_branch
      %24 = sbr.rel (0) target = $region25
    $region24: #{tpu_custom_call.1} parent=1 // pred_region
      _
    $region25: #{tpu_custom_call.1} parent=1 // pred_fallthru
      _
    // Predicated region
    $region26: #{tpu_custom_call.1} parent=1 // pred_check
      _
    $region27: #{tpu_custom_call.1} parent=1 // pred_check_branch
      %26 = sbr.rel (0) target = $region29
    $region28: #{tpu_custom_call.1} parent=1 // pred_region
      _
    $region29: #{tpu_custom_call.1} parent=1 // pred_fallthru
      _
    %v27 = vld [vmem:[%s0] sm:$0xff]
    %v28 = vld [vmem:[%s1] sm:$0xff]
    %v29 = vld [vmem:[%s1 + $0x8] sm:$0xff]
    %v30 = vld [vmem:[%s1 + $0x10] sm:$0xff]
    %v31 = vld [vmem:[%s1 + $0x18] sm:$0xff]
    %v32 = vld [vmem:[%s2] sm:$0xff]
    %v33 = vld [vmem:[%s2 + $0x8] sm:$0xff]
    %v34 = vld [vmem:[%s2 + $0x10] sm:$0xff]
    %v35 = vld [vmem:[%s2 + $0x18] sm:$0xff]
    %37 = vset.pattern.permute.xlu0 0
    %38 = vperm.xlu0 %37, %v32
    %v39 = vpop.permute.xlu0 %38
    %42 = vset.pattern.permute.xlu0 0
    %43 = vperm.xlu0 %42, %v33
    %v44 = vpop.permute.xlu0 %43
    %47 = vset.pattern.permute.xlu0 0
    %48 = vperm.xlu0 %47, %v34
    %v49 = vpop.permute.xlu0 %48
    %52 = vset.pattern.permute.xlu0 0
    %53 = vperm.xlu0 %52, %v35
    %v54 = vpop.permute.xlu0 %53
    %vm56 = vcmask 64512
    %v58 = vsel %vm56, %v28, 0
    %v61 = vsel %vm56, %v29, 0
    %v64 = vsel %vm56, %v30, 0
    %v67 = vsel %vm56, %v31, 0
    %69 = vmatprep.subr.mxu0 0.0
    %70 = vmatpush1.msra.mxu0 0.0
    %71 = vmatprep.subr.mxu0 0.0
    %72 = vmatpush1.msra.mxu0 0.0
    %73 = vmatprep.subr.mxu0 0.0
    %74 = vmatpush1.msra.mxu0 0.0
    %75 = vmatprep.subr.mxu0 0.0
    %76 = vmatpush1.msra.mxu0 0.0
    %77 = vmatprep.subr.mxu0 0.0
    %78 = vmatpush1.msra.mxu0 0.0
    %79 = vmatprep.subr.mxu0 0.0
    %80 = vmatpush1.msra.mxu0 0.0
    %81 = vmatprep.subr.mxu0 0.0
    %82 = vmatpush1.msra.mxu0 0.0
    %83 = vmatprep.subr.mxu0 0.0
    %84 = vmatpush1.msra.mxu0 0.0
    %85 = vmatprep.subr.mxu0 0.0
    %86 = vmatpush1.msra.mxu0 0.0
    %87 = vmatprep.subr.mxu0 0.0
    %88 = vmatpush1.msra.mxu0 0.0
    %89 = vmatprep.subr.mxu0 0.0
    %90 = vmatpush1.msra.mxu0 0.0
    %91 = vmatprep.subr.mxu0 0.0
    %92 = vmatpush1.msra.mxu0 0.0
    %93 = vmatprep.subr.mxu0 0.0
    %94 = vmatpush1.msra.mxu0 0.0
    %95 = vmatprep.subr.mxu0 0.0
    %96 = vmatpush1.msra.mxu0 0.0
    %97 = vmatprep.subr.mxu0 0.0
    %98 = vmatpush1.msra.mxu0 0.0
    %99 = vmatprep.subr.mxu0 0.0
    %100 = vmatpush1.msra.mxu0 %v27
    %101 = vmatprep.subr.mxu0 0.0
    %102 = vmatpush2.msra.mxu0 0.0
    %103 = vmatprep.subr.mxu0 0.0
    %104 = vmatpush2.msra.mxu0 0.0
    %105 = vmatprep.subr.mxu0 0.0
    %106 = vmatpush2.msra.mxu0 0.0
    %107 = vmatprep.subr.mxu0 0.0
    %108 = vmatpush2.msra.mxu0 0.0
    %109 = vmatprep.subr.mxu0 0.0
    %110 = vmatpush2.msra.mxu0 0.0
    %111 = vmatprep.subr.mxu0 0.0
    %112 = vmatpush2.msra.mxu0 0.0
    %113 = vmatprep.subr.mxu0 0.0
    %114 = vmatpush2.msra.mxu0 0.0
    %115 = vmatprep.subr.mxu0 0.0
    %116 = vmatpush2.msra.mxu0 0.0
    %117 = vmatprep.subr.mxu0 0.0
    %118 = vmatpush2.msra.mxu0 0.0
    %119 = vmatprep.subr.mxu0 0.0
    %120 = vmatpush2.msra.mxu0 0.0
    %121 = vmatprep.subr.mxu0 0.0
    %122 = vmatpush2.msra.mxu0 0.0
    %123 = vmatprep.subr.mxu0 0.0
    %124 = vmatpush2.msra.mxu0 0.0
    %125 = vmatprep.subr.mxu0 0.0
    %126 = vmatpush2.msra.mxu0 0.0
    %127 = vmatprep.subr.mxu0 0.0
    %128 = vmatpush2.msra.mxu0 0.0
    %129 = vmatprep.subr.mxu0 0.0
    %130 = vmatpush2.msra.mxu0 0.0
    %131 = vmatprep.subr.mxu0 0.0
    %132 = vmatpush2.msra.mxu0 0.0
    %133 = vmatprep.mubr.f32.mxu0 0.0
    %134 = vmatmul.mubr.f32.gmra.mxu0 %v58
    %v135 = vpop.f32.mrf.mxu0
    %v136 = vadd.f32 %v39, %v135
    %v137 = vpop.f32.mrf.mxu0
    %138 = vmatprep.mubr.f32.mxu0 0.0
    %139 = vmatmul.mubr.f32.gmra.mxu0 %v61
    %v140 = vpop.f32.mrf.mxu0
    %v141 = vadd.f32 %v44, %v140
    %v142 = vpop.f32.mrf.mxu0
    %143 = vmatprep.mubr.f32.mxu0 0.0
    %144 = vmatmul.mubr.f32.gmra.mxu0 %v64
    %v145 = vpop.f32.mrf.mxu0
    %v146 = vadd.f32 %v49, %v145
    %v147 = vpop.f32.mrf.mxu0
    %148 = vmatprep.mubr.f32.mxu0 0.0
    %149 = vmatmul.mubr.f32.gmra.mxu0 %v67
    %v150 = vpop.f32.mrf.mxu0
    %v151 = vadd.f32 %v54, %v150
    %v152 = vpop.f32.mrf.mxu0
    %153 = vdwg.mxu0
    %v154 = vld [vmem:[%s3] sm:$0xff]
    %v155 = vld [vmem:[%s3 + $0x8] sm:$0xff]
    %v156 = vld [vmem:[%s3 + $0x10] sm:$0xff]
    %v157 = vld [vmem:[%s3 + $0x18] sm:$0xff]
    %v158 = vld [vmem:[%s4] sm:$0xff]
    %v159 = vld [vmem:[%s4 + $0x8] sm:$0xff]
    %v160 = vld [vmem:[%s4 + $0x10] sm:$0xff]
    %v161 = vld [vmem:[%s4 + $0x18] sm:$0xff]
    %163 = vset.pattern.permute.xlu0 0
    %164 = vperm.xlu0 %163, %v158
    %v165 = vpop.permute.xlu0 %164
    %168 = vset.pattern.permute.xlu0 0
    %169 = vperm.xlu0 %168, %v159
    %v170 = vpop.permute.xlu0 %169
    %173 = vset.pattern.permute.xlu0 0
    %174 = vperm.xlu0 %173, %v160
    %v175 = vpop.permute.xlu0 %174
    %178 = vset.pattern.permute.xlu0 0
    %179 = vperm.xlu0 %178, %v161
    %v180 = vpop.permute.xlu0 %179
    %v183 = vsel %vm56, %v154, 0
    %v186 = vsel %vm56, %v155, 0
    %v189 = vsel %vm56, %v156, 0
    %v192 = vsel %vm56, %v157, 0
    %194 = vmatprep.subr.mxu0 0.0
    %195 = vmatpush1.msra.mxu0 0.0
    %196 = vmatprep.subr.mxu0 0.0
    %197 = vmatpush1.msra.mxu0 0.0
    %198 = vmatprep.subr.mxu0 0.0
    %199 = vmatpush1.msra.mxu0 0.0
    %200 = vmatprep.subr.mxu0 0.0
    %201 = vmatpush1.msra.mxu0 0.0
    %202 = vmatprep.subr.mxu0 0.0
    %203 = vmatpush1.msra.mxu0 0.0
    %204 = vmatprep.subr.mxu0 0.0
    %205 = vmatpush1.msra.mxu0 0.0
    %206 = vmatprep.subr.mxu0 0.0
    %207 = vmatpush1.msra.mxu0 0.0
    %208 = vmatprep.subr.mxu0 0.0
    %209 = vmatpush1.msra.mxu0 0.0
    %210 = vmatprep.subr.mxu0 0.0
    %211 = vmatpush1.msra.mxu0 0.0
    %212 = vmatprep.subr.mxu0 0.0
    %213 = vmatpush1.msra.mxu0 0.0
    %214 = vmatprep.subr.mxu0 0.0
    %215 = vmatpush1.msra.mxu0 0.0
    %216 = vmatprep.subr.mxu0 0.0
    %217 = vmatpush1.msra.mxu0 0.0
    %218 = vmatprep.subr.mxu0 0.0
    %219 = vmatpush1.msra.mxu0 0.0
    %220 = vmatprep.subr.mxu0 0.0
    %221 = vmatpush1.msra.mxu0 0.0
    %222 = vmatprep.subr.mxu0 0.0
    %223 = vmatpush1.msra.mxu0 0.0
    %224 = vmatprep.subr.mxu0 0.0
    %225 = vmatpush1.msra.mxu0 %v27
    %226 = vmatprep.subr.mxu0 0.0
    %227 = vmatpush2.msra.mxu0 0.0
    %228 = vmatprep.subr.mxu0 0.0
    %229 = vmatpush2.msra.mxu0 0.0
    %230 = vmatprep.subr.mxu0 0.0
    %231 = vmatpush2.msra.mxu0 0.0
    %232 = vmatprep.subr.mxu0 0.0
    %233 = vmatpush2.msra.mxu0 0.0
    %234 = vmatprep.subr.mxu0 0.0
    %235 = vmatpush2.msra.mxu0 0.0
    %236 = vmatprep.subr.mxu0 0.0
    %237 = vmatpush2.msra.mxu0 0.0
    %238 = vmatprep.subr.mxu0 0.0
    %239 = vmatpush2.msra.mxu0 0.0
    %240 = vmatprep.subr.mxu0 0.0
    %241 = vmatpush2.msra.mxu0 0.0
    %242 = vmatprep.subr.mxu0 0.0
    %243 = vmatpush2.msra.mxu0 0.0
    %244 = vmatprep.subr.mxu0 0.0
    %245 = vmatpush2.msra.mxu0 0.0
    %246 = vmatprep.subr.mxu0 0.0
    %247 = vmatpush2.msra.mxu0 0.0
    %248 = vmatprep.subr.mxu0 0.0
    %249 = vmatpush2.msra.mxu0 0.0
    %250 = vmatprep.subr.mxu0 0.0
    %251 = vmatpush2.msra.mxu0 0.0
    %252 = vmatprep.subr.mxu0 0.0
    %253 = vmatpush2.msra.mxu0 0.0
    %254 = vmatprep.subr.mxu0 0.0
    %255 = vmatpush2.msra.mxu0 0.0
    %256 = vmatprep.subr.mxu0 0.0
    %257 = vmatpush2.msra.mxu0 0.0
    %258 = vmatprep.mubr.f32.mxu0 0.0
    %259 = vmatmul.mubr.f32.gmra.mxu0 %v183
    %v260 = vpop.f32.mrf.mxu0
    %v261 = vadd.f32 %v165, %v260
    %v262 = vpop.f32.mrf.mxu0
    %263 = vmatprep.mubr.f32.mxu0 0.0
    %264 = vmatmul.mubr.f32.gmra.mxu0 %v186
    %v265 = vpop.f32.mrf.mxu0
    %v266 = vadd.f32 %v170, %v265
    %v267 = vpop.f32.mrf.mxu0
    %268 = vmatprep.mubr.f32.mxu0 0.0
    %269 = vmatmul.mubr.f32.gmra.mxu0 %v189
    %v270 = vpop.f32.mrf.mxu0
    %v271 = vadd.f32 %v175, %v270
    %v272 = vpop.f32.mrf.mxu0
    %273 = vmatprep.mubr.f32.mxu0 0.0
    %274 = vmatmul.mubr.f32.gmra.mxu0 %v192
    %v275 = vpop.f32.mrf.mxu0
    %v276 = vadd.f32 %v180, %v275
    %v277 = vpop.f32.mrf.mxu0
    %278 = vdwg.mxu0
    %v279 = vxor.u32 %v261, 2147483648
    %v280 = vxor.u32 %v266, 2147483648
    %v281 = vxor.u32 %v271, 2147483648
    %v282 = vxor.u32 %v276, 2147483648
    %v283 = vmul.f32 %v279, 1.442695
    %v284 = vpow.pop %v283
    %v285 = vmul.f32 %v280, 1.442695
    %v286 = vpow.pop %v285
    %v287 = vmul.f32 %v281, 1.442695
    %v288 = vpow.pop %v287
    %v289 = vmul.f32 %v282, 1.442695
    %v290 = vpow.pop %v289
    %v291 = vadd.f32 %v284, 1.0
    %v292 = vadd.f32 %v286, 1.0
    %v293 = vadd.f32 %v288, 1.0
    %v294 = vadd.f32 %v290, 1.0
    %v295 = vrcp.pop %v291
    %v296 = vmul.f32 1.0, %v295
    %v297 = vrcp.pop %v292
    %v298 = vmul.f32 1.0, %v297
    %v299 = vrcp.pop %v293
    %v300 = vmul.f32 1.0, %v299
    %v301 = vrcp.pop %v294
    %v302 = vmul.f32 1.0, %v301
    %v303 = vmul.f32 %v261, %v296
    %v304 = vmul.f32 %v266, %v298
    %v305 = vmul.f32 %v271, %v300
    %v306 = vmul.f32 %v276, %v302
    %v307 = vmul.f32 %v136, %v303
    %v308 = vmul.f32 %v141, %v304
    %v309 = vmul.f32 %v146, %v305
    %v310 = vmul.f32 %v151, %v306
    %v311 = vld [vmem:[%s5] sm:$0xff]
    %v312 = vld [vmem:[%s6] sm:$0xff]
    %314 = vset.pattern.permute.xlu0 0
    %315 = vperm.xlu0 %314, %v312
    %v316 = vpop.permute.xlu0 %315
    %vm318 = vcmask 261120
    %v320 = vsel %vm318, %v311, 0
    %322 = vmatprep.subr.mxu0 0.0
    %323 = vmatpush1.msra.mxu0 0.0
    %324 = vmatprep.subr.mxu0 0.0
    %325 = vmatpush1.msra.mxu0 0.0
    %326 = vmatprep.subr.mxu0 0.0
    %327 = vmatpush1.msra.mxu0 0.0
    %328 = vmatprep.subr.mxu0 0.0
    %329 = vmatpush1.msra.mxu0 0.0
    %330 = vmatprep.subr.mxu0 0.0
    %331 = vmatpush1.msra.mxu0 0.0
    %332 = vmatprep.subr.mxu0 0.0
    %333 = vmatpush1.msra.mxu0 0.0
    %334 = vmatprep.subr.mxu0 0.0
    %335 = vmatpush1.msra.mxu0 0.0
    %336 = vmatprep.subr.mxu0 0.0
    %337 = vmatpush1.msra.mxu0 0.0
    %338 = vmatprep.subr.mxu0 0.0
    %339 = vmatpush1.msra.mxu0 0.0
    %340 = vmatprep.subr.mxu0 0.0
    %341 = vmatpush1.msra.mxu0 0.0
    %342 = vmatprep.subr.mxu0 0.0
    %343 = vmatpush1.msra.mxu0 0.0
    %344 = vmatprep.subr.mxu0 0.0
    %345 = vmatpush1.msra.mxu0 0.0
    %346 = vmatprep.subr.mxu0 0.0
    %347 = vmatpush1.msra.mxu0 %v310
    %348 = vmatprep.subr.mxu0 0.0
    %349 = vmatpush1.msra.mxu0 %v309
    %350 = vmatprep.subr.mxu0 0.0
    %351 = vmatpush1.msra.mxu0 %v308
    %352 = vmatprep.subr.mxu0 0.0
    %353 = vmatpush1.msra.mxu0 %v307
    %354 = vmatprep.subr.mxu0 0.0
    %355 = vmatpush2.msra.mxu0 0.0
    %356 = vmatprep.subr.mxu0 0.0
    %357 = vmatpush2.msra.mxu0 0.0
    %358 = vmatprep.subr.mxu0 0.0
    %359 = vmatpush2.msra.mxu0 0.0
    %360 = vmatprep.subr.mxu0 0.0
    %361 = vmatpush2.msra.mxu0 0.0
    %362 = vmatprep.subr.mxu0 0.0
    %363 = vmatpush2.msra.mxu0 0.0
    %364 = vmatprep.subr.mxu0 0.0
    %365 = vmatpush2.msra.mxu0 0.0
    %366 = vmatprep.subr.mxu0 0.0
    %367 = vmatpush2.msra.mxu0 0.0
    %368 = vmatprep.subr.mxu0 0.0
    %369 = vmatpush2.msra.mxu0 0.0
    %370 = vmatprep.subr.mxu0 0.0
    %371 = vmatpush2.msra.mxu0 0.0
    %372 = vmatprep.subr.mxu0 0.0
    %373 = vmatpush2.msra.mxu0 0.0
    %374 = vmatprep.subr.mxu0 0.0
    %375 = vmatpush2.msra.mxu0 0.0
    %376 = vmatprep.subr.mxu0 0.0
    %377 = vmatpush2.msra.mxu0 0.0
    %378 = vmatprep.subr.mxu0 0.0
    %379 = vmatpush2.msra.mxu0 0.0
    %380 = vmatprep.subr.mxu0 0.0
    %381 = vmatpush2.msra.mxu0 0.0
    %382 = vmatprep.subr.mxu0 0.0
    %383 = vmatpush2.msra.mxu0 0.0
    %384 = vmatprep.subr.mxu0 0.0
    %385 = vmatpush2.msra.mxu0 0.0
    %386 = vmatprep.mubr.f32.mxu0 0.0
    %387 = vmatmul.mubr.f32.gmra.mxu0 %v320
    %v388 = vpop.f32.mrf.mxu0
    %v389 = vadd.f32 %v316, %v388
    %v390 = vpop.f32.mrf.mxu0
    %391 = vdwg.mxu0
    %392 = vst [vmem:[#allocation2] sm:$0xff] %v389
    // Predicated region
    $region30: #{tpu_custom_call.1} parent=1 // pred_check
      _
    $region31: #{tpu_custom_call.1} parent=1 // pred_check_branch
      %394 = sbr.rel (0) target = $region33
    $region32: #{tpu_custom_call.1} parent=1 // pred_region
      %s396 = ssub.s32 128, 128
      %397 = vsyncadd [#allocation3], %s396
      %s399 = sshll.u32 [#allocation2], 4
      %s400 = int_to_ptr.vmem [resolvable:$true] %s399
      %402 = dma.vmem_to_hbm [thread:$0]  %s400, 128, %s7, [#allocation3]
    $region33: #{tpu_custom_call.1} parent=1 // pred_fallthru
      _
    // Predicated region
    $region34: #{tpu_custom_call.1} parent=1 // pred_check
      _
    $region35: #{tpu_custom_call.1} parent=1 // pred_check_branch
      %404 = sbr.rel (0) target = $region37
    $region36: #{tpu_custom_call.1} parent=1 // pred_region
      %405 = dma.done [#allocation3], 128
    $region37: #{tpu_custom_call.1} parent=1 // pred_fallthru
      _
    %406 = vsyncpa [#allocation3], 1

</llo_original>
